<compile_context>
chip_gen: v6e
topology: v6e:2x2x1
jax: 0.10.0
libtpu: 0.0.40
codegen_flags: <defaults>
</compile_context>

<pallas_src>
import functools

import jax
import jax.numpy as jnp
from jax import lax
from jax.experimental import pallas as pl
from jax.experimental.pallas import tpu as pltpu

_LANES = 128
_SUBLANES = 8
_CHUNK_ROWS = 1024          # compute granularity inside a block (512 KiB f32)
_SINGLE_BLOCK_ROWS = 2048   # <= this many rows -> one full-extent block


def _default_num_cores():
    """2 on chips with two TensorCores (v7x / v4-style megacore), else 1."""
    try:
        kind = jax.devices()[0].device_kind.lower()
    except Exception:
        return 1
    if any(s in kind for s in ("v7", "7x", "v4", "v5p")):
        return 2
    return 1


def _dice_bce_kernel(x_ref, t_ref, inter_ref, xt_ref, bce_ref, *,
                     block_rows, chunk_rows, n_chunks, blocks_per_core,
                     total_rows, first_masked_block, mask_needed):
    c = pl.program_id(0)   # core-split ("parallel") axis
    j = pl.program_id(1)   # reduction ("arbitrary") axis

    @pl.when(j == 0)
    def _():
        inter_ref[...] = jnp.zeros_like(inter_ref)
        xt_ref[...] = jnp.zeros_like(xt_ref)
        bce_ref[...] = jnp.zeros_like(bce_ref)

    def fold(v):
        # (chunk_rows, 128) -> (8, 128) partial sums; VALU-only adds (all
        # cross-lane/sublane reductions are deferred to the wrapper epilogue).
        return v.reshape(chunk_rows // _SUBLANES, _SUBLANES, _LANES).sum(axis=0)

    def chunk_sums(ci, row0, masked):
        off = ci * chunk_rows
        if not isinstance(off, int):
            off = pl.multiple_of(off, chunk_rows)
        x = x_ref[pl.ds(off, chunk_rows), :].astype(jnp.float32)
        t = t_ref[pl.ds(off, chunk_rows), :].astype(jnp.float32)
        if masked:
            # Rows past the logical end (ragged Pallas edge block and/or
            # index-clamped duplicate blocks) are zeroed BEFORE the logs:
            # (x=0, t=0) contributes exactly 0 to every sum, including BCE via
            # the -100 clamp (log(0) -> -100, weighted by t = 0).
            row = row0 + off + lax.broadcasted_iota(jnp.int32, x.shape, 0)
            valid = row < total_rows
            zero = jnp.zeros_like(x)
            x = jnp.where(valid, x, zero)
            t = jnp.where(valid, t, zero)
        # torch F.binary_cross_entropy clamps each log term at -100.
        log_x = jnp.maximum(jnp.log(x), -100.0)
        log_1mx = jnp.maximum(jnp.log(1.0 - x), -100.0)
        # t*log(x) + (1-t)*log(1-x) with one fewer multiply; the overall
        # negation is applied once, on the final scalar, in the wrapper.
        bce = log_1mx + t * (log_x - log_1mx)
        return fold(x * t), fold(x + t), fold(bce)

    def accumulate(masked):
        block_idx = c * blocks_per_core + j
        row0 = block_idx * block_rows
        if n_chunks == 1:
            di, dx, db = chunk_sums(0, row0, masked)
        else:
            zeros = jnp.zeros((_SUBLANES, _LANES), jnp.float32)

            def body(ci, carry):
                ai, ax, ab = carry
                pi, px, pb = chunk_sums(ci, row0, masked)
                return ai + pi, ax + px, ab + pb

            di, dx, db = lax.fori_loop(0, n_chunks, body, (zeros, zeros, zeros))
        inter_ref[0] += di
        xt_ref[0] += dx
        bce_ref[0] += db

    if mask_needed:
        # Only the tail / duplicate blocks pay for the iota + where masking.
        block_idx = c * blocks_per_core + j
        is_tail = block_idx >= first_masked_block

        @pl.when(is_tail)
        def _():
            accumulate(masked=True)

        @pl.when(jnp.logical_not(is_tail))
        def _():
            accumulate(masked=False)
    else:
        accumulate(masked=False)


def dice_bce_loss(inputs, targets, smooth=1.0, bce_weight=0.5,
                  block_rows=8192, num_cores=None):
    """DiceBCELoss.forward: `inputs` are probabilities in [0,1], `targets` masks."""
    x = jnp.asarray(inputs).reshape(-1)
    t = jnp.asarray(targets).reshape(-1)
    # Keep bf16 inputs as-is (halves HBM traffic on this bandwidth-bound
    # kernel); promote anything else to f32.  Accumulation is f32 in-kernel.
    if x.dtype != jnp.float32 and x.dtype != jnp.bfloat16:
        x = x.astype(jnp.float32)
    if t.dtype != jnp.float32 and t.dtype != jnp.bfloat16:
        t = t.astype(jnp.float32)
    n = x.shape[0]

    if num_cores is None:
        num_cores = _default_num_cores()
    num_cores = max(1, int(num_cores))

    use_bf16 = (x.dtype == jnp.bfloat16) or (t.dtype == jnp.bfloat16)
    sub = 2 * _SUBLANES if use_bf16 else _SUBLANES

    # Block-size cap: chunk-aligned, at least one chunk.
    cap = max(_CHUNK_ROWS, (int(block_rows) // _CHUNK_ROWS) * _CHUNK_ROWS)
    single_thresh = min(cap, _SINGLE_BLOCK_ROWS)

    rows_unpadded = pl.cdiv(n, _LANES)

    if rows_unpadded <= single_thresh:
        # ---- small inputs: one full-extent block, no masking ---------------
        # Pad to (sub*128) alignment (tiny copy at this size); appended zeros
        # contribute exactly 0 to every sum (incl. BCE via the -100 clamp).
        pad = (-n) % (sub * _LANES)
        if pad:
            x = jnp.pad(x, (0, pad))
            t = jnp.pad(t, (0, pad))
        rows = (n + pad) // _LANES
        block_rows_eff = rows
        chunk_rows = rows
        n_chunks = 1
        num_cores = 1
        blocks_per_core = 1
        total_blocks = 1
        first_masked_block = 1
        mask_needed = False
    else:
        # ---- large inputs: streamed chunk-aligned blocks -------------------
        # Only lane alignment (n % 128) ever pads here; for typical NCHW sizes
        # this is zero, so there is no full-array copy before the kernel.  The
        # ragged last block is handled by the pl.when-gated in-kernel mask.
        lane_pad = (-n) % _LANES
        if lane_pad:
            # TODO(synk): n % 128 != 0 on a huge input still costs one pad copy;
            # a manual-DMA (pl.ANY) path could avoid it but isn't worth the risk.
            x = jnp.pad(x, (0, lane_pad))
            t = jnp.pad(t, (0, lane_pad))
        rows = (n + lane_pad) // _LANES

        # Balance the grid: num_cores * steps equal chunk-aligned blocks that
        # cover `rows`, so fully out-of-range duplicate blocks are avoided in
        # the common case (clamped index_map + mask remain as a safety net).
        steps = pl.cdiv(rows, num_cores * cap)
        block_rows_eff = _CHUNK_ROWS * pl.cdiv(
            pl.cdiv(rows, num_cores * steps), _CHUNK_ROWS)
        block_rows_eff = min(block_rows_eff, (rows // _CHUNK_ROWS) * _CHUNK_ROWS)
        block_rows_eff = min(block_rows_eff, cap)
        chunk_rows = min(_CHUNK_ROWS, block_rows_eff)
        n_chunks = block_rows_eff // chunk_rows
        total_blocks = pl.cdiv(rows, block_rows_eff)
        num_cores = min(num_cores, total_blocks)
        blocks_per_core = pl.cdiv(total_blocks, num_cores)
        first_masked_block = rows // block_rows_eff
        mask_needed = (num_cores * blocks_per_core) > first_masked_block

    grid = (num_cores, blocks_per_core)
    x2 = x.reshape(rows, _LANES)   # free view of the contiguous flatten
    t2 = t.reshape(rows, _LANES)

    if num_cores * blocks_per_core > total_blocks:
        def in_index(c, j):
            # Clamp so duplicate (fully masked) blocks never DMA past the end.
            return (jnp.minimum(c * blocks_per_core + j, total_blocks - 1), 0)
    else:
        def in_index(c, j):
            return (c * blocks_per_core + j, 0)

    kernel = functools.partial(
        _dice_bce_kernel,
        block_rows=block_rows_eff, chunk_rows=chunk_rows, n_chunks=n_chunks,
        blocks_per_core=blocks_per_core, total_rows=rows,
        first_masked_block=first_masked_block, mask_needed=mask_needed)

    part_shape = jax.ShapeDtypeStruct((num_cores, _SUBLANES, _LANES), jnp.float32)
    part_spec = pl.BlockSpec((1, _SUBLANES, _LANES), lambda c, j: (c, 0, 0))

    # VMEM budget: 2x-buffered input blocks + chunked f32 intermediates + slack.
    in_bytes = 2 * block_rows_eff * _LANES * (x2.dtype.itemsize + t2.dtype.itemsize)
    inter_bytes = 8 * chunk_rows * _LANES * 4
    vmem_limit = int(in_bytes + inter_bytes + (8 << 20))

    inter_p, xt_p, bce_p = pl.pallas_call(
        kernel,
        out_shape=(part_shape, part_shape, part_shape),
        grid_spec=pltpu.PrefetchScalarGridSpec(
            num_scalar_prefetch=0,
            grid=grid,
            in_specs=[
                pl.BlockSpec((block_rows_eff, _LANES), in_index),
                pl.BlockSpec((block_rows_eff, _LANES), in_index),
            ],
            out_specs=(part_spec, part_spec, part_spec),
        ),
        compiler_params=pltpu.CompilerParams(
            dimension_semantics=("parallel", "arbitrary"),
            vmem_limit_bytes=vmem_limit),
    )(x2, t2)

    # Tiny epilogue in plain JAX (3 * num_cores * 1024 floats).
    intersection = jnp.sum(inter_p)
    sum_x_plus_t = jnp.sum(xt_p)
    bce_mean = -jnp.sum(bce_p) / jnp.float32(n)
    dice_loss = 1.0 - (2.0 * intersection + smooth) / (sum_x_plus_t + smooth)
    return bce_weight * bce_mean + dice_loss


def _reference(inputs, targets, smooth=1.0, bce_weight=0.5):
    x = jnp.asarray(inputs, jnp.float32).reshape(-1)
    t = jnp.asarray(targets, jnp.float32).reshape(-1)
    inter = jnp.sum(x * t)
    dice = 1.0 - (2.0 * inter + smooth) / (jnp.sum(x) + jnp.sum(t) + smooth)
    bce = jnp.mean(-(t * jnp.maximum(jnp.log(x), -100.0)
                     + (1.0 - t) * jnp.maximum(jnp.log(1.0 - x), -100.0)))
    return bce_weight * bce + dice


if __name__ == "__main__":
    key = jax.random.PRNGKey(0)
    cases = [
        ((2, 4, 16, 16), {}),      # small aligned NCHW: single block, no pad
        ((2, 3, 33, 65), {}),      # ragged small: tiny sub-tile pad, single block
        ((3, 4, 256, 256), {}),    # mid: streamed chunked blocks, no mask
        ((4, 4, 128, 256), {}),    # large: default 8192-row blocks, 8-chunk loop
        ((2, 4, 128, 130), dict(block_rows=1024)),  # ragged edge block + pl.when mask
    ]
    for shape, kwargs in cases:
        key, k1, k2 = jax.random.split(key, 3)
        logits = jax.random.normal(k1, shape, dtype=jnp.float32)
        inputs = jax.nn.sigmoid(logits)                       # probs in (0, 1)
        targets = (jax.random.uniform(k2, shape) > 0.5).astype(jnp.float32)

        loss = dice_bce_loss(inputs, targets, smooth=1.0, bce_weight=0.5, **kwargs)
        jax.block_until_ready(loss)

        ref = _reference(inputs, targets, smooth=1.0, bce_weight=0.5)
        assert jnp.allclose(loss, ref, rtol=1e-4, atol=1e-4), (shape, loss, ref)

    print("KERNEL_OK")
</pallas_src>

<mosaic_0001>
module attributes {stable_mosaic.version = 11 : i64} {
  func.func @_dice_bce_kernel(%arg0: i32, %arg1: i32, %arg2: memref<16x128xf32, #tpu.memory_space<vmem>>, %arg3: memref<16x128xf32, #tpu.memory_space<vmem>>, %arg4: memref<1x8x128xf32, #tpu.memory_space<vmem>>, %arg5: memref<1x8x128xf32, #tpu.memory_space<vmem>>, %arg6: memref<1x8x128xf32, #tpu.memory_space<vmem>>) attributes {dimension_semantics = [#tpu.dimension_semantics<parallel>, #tpu.dimension_semantics<arbitrary>], iteration_bounds = array<i64: 1, 1>, scalar_prefetch = 0 : i64, scratch_operands = 0 : i64, tpu.core_type = #tpu.core_type<tc>, window_params = [{transform_indices = @transform_0, window_bounds = array<i64: 16, 128>}, {transform_indices = @transform_1, window_bounds = array<i64: 16, 128>}, {transform_indices = @transform_2, window_bounds = array<i64: 1, 8, 128>}, {transform_indices = @transform_3, window_bounds = array<i64: 1, 8, 128>}, {transform_indices = @transform_4, window_bounds = array<i64: 1, 8, 128>}]} {
    %c0_i32 = arith.constant 0 : i32
    %0 = arith.cmpi eq, %arg1, %c0_i32 : i32
    %1 = arith.extui %0 : i1 to i32
    %c0_i32_0 = arith.constant 0 : i32
    %2 = arith.cmpi ne, %1, %c0_i32_0 : i32
    scf.if %2 {
      %cst_27 = arith.constant 0.000000e+00 : f32
      %42 = vector.broadcast %cst_27 : f32 to vector<1x8x128xf32>
      %c0_28 = arith.constant 0 : index
      %c0_29 = arith.constant 0 : index
      %c0_30 = arith.constant 0 : index
      %43 = vector.load %arg4[%c0_28, %c0_29, %c0_30] : memref<1x8x128xf32, #tpu.memory_space<vmem>>, vector<1x8x128xf32>
      tpu.vector_store %arg4[%c0_28, %c0_29, %c0_30], %42 {strides = array<i32>} : memref<1x8x128xf32, #tpu.memory_space<vmem>>, vector<1x8x128xf32>,
      %cst_31 = arith.constant 0.000000e+00 : f32
      %44 = vector.broadcast %cst_31 : f32 to vector<1x8x128xf32>
      %c0_32 = arith.constant 0 : index
      %c0_33 = arith.constant 0 : index
      %c0_34 = arith.constant 0 : index
      %45 = vector.load %arg5[%c0_32, %c0_33, %c0_34] : memref<1x8x128xf32, #tpu.memory_space<vmem>>, vector<1x8x128xf32>
      tpu.vector_store %arg5[%c0_32, %c0_33, %c0_34], %44 {strides = array<i32>} : memref<1x8x128xf32, #tpu.memory_space<vmem>>, vector<1x8x128xf32>,
      %cst_35 = arith.constant 0.000000e+00 : f32
      %46 = vector.broadcast %cst_35 : f32 to vector<1x8x128xf32>
      %c0_36 = arith.constant 0 : index
      %c0_37 = arith.constant 0 : index
      %c0_38 = arith.constant 0 : index
      %47 = vector.load %arg6[%c0_36, %c0_37, %c0_38] : memref<1x8x128xf32, #tpu.memory_space<vmem>>, vector<1x8x128xf32>
      tpu.vector_store %arg6[%c0_36, %c0_37, %c0_38], %46 {strides = array<i32>} : memref<1x8x128xf32, #tpu.memory_space<vmem>>, vector<1x8x128xf32>,
    } else {
    }
    %c0 = arith.constant 0 : index
    %c0_1 = arith.constant 0 : index
    %3 = vector.load %arg2[%c0, %c0_1] : memref<16x128xf32, #tpu.memory_space<vmem>>, vector<16x128xf32>
    %c0_2 = arith.constant 0 : index
    %c0_3 = arith.constant 0 : index
    %4 = vector.load %arg3[%c0_2, %c0_3] : memref<16x128xf32, #tpu.memory_space<vmem>>, vector<16x128xf32>
    %5 = math.log %3 : vector<16x128xf32>
    %cst = arith.constant -1.000000e+02 : f32
    %6 = vector.broadcast %cst : f32 to vector<16x128xf32>
    %7 = arith.maximumf %5, %6 : vector<16x128xf32>
    %cst_4 = arith.constant 1.000000e+00 : f32
    %8 = vector.broadcast %cst_4 : f32 to vector<16x128xf32>
    %9 = arith.subf %8, %3 : vector<16x128xf32>
    %10 = math.log %9 : vector<16x128xf32>
    %cst_5 = arith.constant -1.000000e+02 : f32
    %11 = vector.broadcast %cst_5 : f32 to vector<16x128xf32>
    %12 = arith.maximumf %10, %11 : vector<16x128xf32>
    %13 = arith.subf %7, %12 : vector<16x128xf32>
    %14 = arith.mulf %4, %13 : vector<16x128xf32>
    %15 = arith.addf %12, %14 : vector<16x128xf32>
    %16 = arith.mulf %3, %4 : vector<16x128xf32>
    %17 = vector.shape_cast %16 : vector<16x128xf32> to vector<2x8x128xf32>
    %cst_6 = arith.constant dense<0.000000e+00> : vector<8x128xf32>
    %18 = vector.multi_reduction <add>, %17, %cst_6 [0] : vector<2x8x128xf32> to vector<8x128xf32>
    %19 = arith.addf %3, %4 : vector<16x128xf32>
    %20 = vector.shape_cast %19 : vector<16x128xf32> to vector<2x8x128xf32>
    %cst_7 = arith.constant dense<0.000000e+00> : vector<8x128xf32>
    %21 = vector.multi_reduction <add>, %20, %cst_7 [0] : vector<2x8x128xf32> to vector<8x128xf32>
    %22 = vector.shape_cast %15 : vector<16x128xf32> to vector<2x8x128xf32>
    %cst_8 = arith.constant dense<0.000000e+00> : vector<8x128xf32>
    %23 = vector.multi_reduction <add>, %22, %cst_8 [0] : vector<2x8x128xf32> to vector<8x128xf32>
    %c0_9 = arith.constant 0 : index
    %c0_10 = arith.constant 0 : index
    %c0_11 = arith.constant 0 : index
    %24 = vector.load %arg4[%c0_9, %c0_10, %c0_11] : memref<1x8x128xf32, #tpu.memory_space<vmem>>, vector<1x8x128xf32>
    %25 = vector.shape_cast %24 : vector<1x8x128xf32> to vector<8x128xf32>
    %26 = arith.addf %25, %18 : vector<8x128xf32>
    %c0_12 = arith.constant 0 : index
    %c0_13 = arith.constant 0 : index
    %c0_14 = arith.constant 0 : index
    %27 = vector.load %arg4[%c0_12, %c0_13, %c0_14] : memref<1x8x128xf32, #tpu.memory_space<vmem>>, vector<1x8x128xf32>
    %28 = vector.shape_cast %27 : vector<1x8x128xf32> to vector<8x128xf32>
    %29 = vector.shape_cast %26 : vector<8x128xf32> to vector<1x8x128xf32>
    tpu.vector_store %arg4[%c0_12, %c0_13, %c0_14], %29 {strides = array<i32>} : memref<1x8x128xf32, #tpu.memory_space<vmem>>, vector<1x8x128xf32>,
    %c0_15 = arith.constant 0 : index
    %c0_16 = arith.constant 0 : index
    %c0_17 = arith.constant 0 : index
    %30 = vector.load %arg5[%c0_15, %c0_16, %c0_17] : memref<1x8x128xf32, #tpu.memory_space<vmem>>, vector<1x8x128xf32>
    %31 = vector.shape_cast %30 : vector<1x8x128xf32> to vector<8x128xf32>
    %32 = arith.addf %31, %21 : vector<8x128xf32>
    %c0_18 = arith.constant 0 : index
    %c0_19 = arith.constant 0 : index
    %c0_20 = arith.constant 0 : index
    %33 = vector.load %arg5[%c0_18, %c0_19, %c0_20] : memref<1x8x128xf32, #tpu.memory_space<vmem>>, vector<1x8x128xf32>
    %34 = vector.shape_cast %33 : vector<1x8x128xf32> to vector<8x128xf32>
    %35 = vector.shape_cast %32 : vector<8x128xf32> to vector<1x8x128xf32>
    tpu.vector_store %arg5[%c0_18, %c0_19, %c0_20], %35 {strides = array<i32>} : memref<1x8x128xf32, #tpu.memory_space<vmem>>, vector<1x8x128xf32>,
    %c0_21 = arith.constant 0 : index
    %c0_22 = arith.constant 0 : index
    %c0_23 = arith.constant 0 : index
    %36 = vector.load %arg6[%c0_21, %c0_22, %c0_23] : memref<1x8x128xf32, #tpu.memory_space<vmem>>, vector<1x8x128xf32>
    %37 = vector.shape_cast %36 : vector<1x8x128xf32> to vector<8x128xf32>
    %38 = arith.addf %37, %23 : vector<8x128xf32>
    %c0_24 = arith.constant 0 : index
    %c0_25 = arith.constant 0 : index
    %c0_26 = arith.constant 0 : index
    %39 = vector.load %arg6[%c0_24, %c0_25, %c0_26] : memref<1x8x128xf32, #tpu.memory_space<vmem>>, vector<1x8x128xf32>
    %40 = vector.shape_cast %39 : vector<1x8x128xf32> to vector<8x128xf32>
    %41 = vector.shape_cast %38 : vector<8x128xf32> to vector<1x8x128xf32>
    tpu.vector_store %arg6[%c0_24, %c0_25, %c0_26], %41 {strides = array<i32>} : memref<1x8x128xf32, #tpu.memory_space<vmem>>, vector<1x8x128xf32>,
    return
  }
  func.func @transform_0(%arg0: i32, %arg1: i32) -> (i32, i32) {
    %c1_i32 = arith.constant 1 : i32
    %0 = arith.muli %arg0, %c1_i32 : i32
    %1 = arith.addi %0, %arg1 : i32
    %c0_i32 = arith.constant 0 : i32
    %c0_i32_0 = arith.constant 0 : i32
    return %1, %c0_i32 : i32, i32
  }
  func.func @transform_1(%arg0: i32, %arg1: i32) -> (i32, i32) {
    %c1_i32 = arith.constant 1 : i32
    %0 = arith.muli %arg0, %c1_i32 : i32
    %1 = arith.addi %0, %arg1 : i32
    %c0_i32 = arith.constant 0 : i32
    %c0_i32_0 = arith.constant 0 : i32
    return %1, %c0_i32 : i32, i32
  }
  func.func @transform_2(%arg0: i32, %arg1: i32) -> (i32, i32, i32) {
    %c0_i32 = arith.constant 0 : i32
    %c0_i32_0 = arith.constant 0 : i32
    %c0_i32_1 = arith.constant 0 : i32
    return %arg0, %c0_i32, %c0_i32_0 : i32, i32, i32
  }
  func.func @transform_3(%arg0: i32, %arg1: i32) -> (i32, i32, i32) {
    %c0_i32 = arith.constant 0 : i32
    %c0_i32_0 = arith.constant 0 : i32
    %c0_i32_1 = arith.constant 0 : i32
    return %arg0, %c0_i32, %c0_i32_0 : i32, i32, i32
  }
  func.func @transform_4(%arg0: i32, %arg1: i32) -> (i32, i32, i32) {
    %c0_i32 = arith.constant 0 : i32
    %c0_i32_0 = arith.constant 0 : i32
    %c0_i32_1 = arith.constant 0 : i32
    return %arg0, %c0_i32, %c0_i32_0 : i32, i32, i32
  }
}

</mosaic_0001>

<llo_original>
// kernel: tpu_custom_call.1
$region0: #{tpu_custom_call.1}
  #allocation0 [shape = 'u32[]', space=smem, size = 0x4, offset = 0x4, fixed_abs, tag = 'smem constant byte address 0x4 - core index']
  #allocation1 [shape = 'u32[144,128]{1,0:T(1,128)}', space=vmem, size = 0x12000, scoped, tag = 'internal scratch']
  %s0 = inlined_call_operand.hbm [shape: f32[16,128], index: 0, kind: input, shape index: {}]
  %s1 = inlined_call_operand.hbm [shape: f32[16,128], index: 1, kind: input, shape index: {}]
  %s2 = inlined_call_operand.hbm [shape: f32[1,8,128], index: 2, kind: output, shape index: {0}]
  %s3 = inlined_call_operand.hbm [shape: f32[1,8,128], index: 3, kind: output, shape index: {1}]
  %s4 = inlined_call_operand.hbm [shape: f32[1,8,128], index: 4, kind: output, shape index: {2}]
  %5 = xla_tuple %s2, %s3, %s4
  %s6 = sld [smem:[#allocation0]]
  $region46: #{tpu_custom_call.1} parent=0
    _
  %s8 = ssub.s32 1, %s6
  %s9 = scalar_select 0, %s8, %s6
  $region1: #{tpu_custom_call.1} parent=0
    #allocation2 [shape = 'u8[8192]{0}', space=vmem, size = 0x2000, scoped, tag = 'input window, operand 0, single buffered']
    #allocation3 [shape = 's32[1]{0}', space=sflag, size = 0x4, scoped, tag = 'scoped memory for tpu_custom_call.1']
    #allocation4 [shape = 's32[1]{0}', space=sflag, size = 0x4, scoped, tag = 'scoped memory for tpu_custom_call.1']
    #allocation5 [shape = 'u8[8192]{0}', space=vmem, size = 0x2000, scoped, tag = 'input window, operand 1, single buffered']
    #allocation6 [shape = 's32[1]{0}', space=sflag, size = 0x4, scoped, tag = 'scoped memory for tpu_custom_call.1']
    #allocation7 [shape = 'u8[4096]{0}', space=vmem, size = 0x1000, scoped, tag = 'output window, operand 0, single buffered']
    #allocation8 [shape = 'u8[4096]{0}', space=vmem, size = 0x1000, scoped, tag = 'output window, operand 1, single buffered']
    #allocation9 [shape = 's32[1]{0}', space=sflag, size = 0x4, scoped, tag = 'scoped memory for tpu_custom_call.1']
    #allocation10 [shape = 'u8[4096]{0}', space=vmem, size = 0x1000, scoped, tag = 'output window, operand 2, single buffered']
    %10 = vsyncpa [#allocation3], 0
    %11 = vsyncpa [#allocation6], 0
    %12 = vsyncpa [#allocation4], 0
    %13 = vsyncpa [#allocation9], 0
    // Predicated region
    $region2: #{tpu_custom_call.1} parent=1 // pred_check
      _
    $region3: #{tpu_custom_call.1} parent=1 // pred_check_branch
      %15 = sbr.rel (0) target = $region5
    $region4: #{tpu_custom_call.1} parent=1 // pred_region
      %s16 = sadd.s32 0, 0
      %s17 = smul.u32 2, %s16
      %s19 = ssub.s32 256, 256
      %20 = vsyncadd [#allocation3], %s19
      %s21 = smul.addr %s17, 128
      %s22 = scalar_lea.hbm %s0, %s21
      %s23 = sshll.u32 [#allocation2], 4
      %s24 = int_to_ptr.vmem [resolvable:$true] %s23
      %29 = dma.hbm_to_vmem [thread:$0]  %s22, 256, %s24, [#allocation3], 128, 128, 8
    $region5: #{tpu_custom_call.1} parent=1 // pred_fallthru
      _
    // Predicated region
    $region6: #{tpu_custom_call.1} parent=1 // pred_check
      _
    $region7: #{tpu_custom_call.1} parent=1 // pred_check_branch
      %31 = sbr.rel (0) target = $region9
    $region8: #{tpu_custom_call.1} parent=1 // pred_region
      %s32 = sadd.s32 0, 0
      %s33 = smul.u32 2, %s32
      %s35 = ssub.s32 256, 256
      %36 = vsyncadd [#allocation6], %s35
      %s37 = smul.addr %s33, 128
      %s38 = scalar_lea.hbm %s1, %s37
      %s39 = sshll.u32 [#allocation5], 4
      %s40 = int_to_ptr.vmem [resolvable:$true] %s39
      %45 = dma.hbm_to_vmem [thread:$0]  %s38, 256, %s40, [#allocation6], 128, 128, 8
    $region9: #{tpu_custom_call.1} parent=1 // pred_fallthru
      _
    // Predicated region
    $region10: #{tpu_custom_call.1} parent=1 // pred_check
      _
    $region11: #{tpu_custom_call.1} parent=1 // pred_check_branch
      %47 = sbr.rel (0) target = $region13
    $region12: #{tpu_custom_call.1} parent=1 // pred_region
      %48 = dma.done [#allocation3], 256
    $region13: #{tpu_custom_call.1} parent=1 // pred_fallthru
      _
    // Predicated region
    $region14: #{tpu_custom_call.1} parent=1 // pred_check
      _
    $region15: #{tpu_custom_call.1} parent=1 // pred_check_branch
      %50 = sbr.rel (0) target = $region17
    $region16: #{tpu_custom_call.1} parent=1 // pred_region
      %51 = dma.done [#allocation6], 256
    $region17: #{tpu_custom_call.1} parent=1 // pred_fallthru
      _
    %s52 = sadd.s32 0, 0
    %s53 = smul.u32 2, %s52
    %s54 = sadd.s32 0, 0
    %s55 = smul.u32 2, %s54
    %p56 = scmp.eq.s32.totalorder 0, 0
    // Predicated region
    $region18: #{tpu_custom_call.1} parent=1 // pred_check
      %p57 = pneg %p56
    $region19: #{tpu_custom_call.1} parent=1 // pred_check_branch
      %59 = sbr.rel (%p57) target = $region21
    $region20: #{tpu_custom_call.1} parent=1 // pred_region
      %60 = vst [vmem:[#allocation7] sm:$0xff] 0.0
      %61 = vst [vmem:[#allocation8] sm:$0xff] 0.0
      %62 = vst [vmem:[#allocation10] sm:$0xff] 0.0
    $region21: #{tpu_custom_call.1} parent=1 // pred_fallthru
      _
    %v63 = vld [vmem:[#allocation2] sm:$0xff]
    %v64 = vld [vmem:[#allocation2 + $0x8] sm:$0xff]
    %v65 = vld [vmem:[#allocation5] sm:$0xff]
    %v66 = vld [vmem:[#allocation5 + $0x8] sm:$0xff]
    %v67 = vlog2.pop %v63
    %v68 = vmul.f32 %v67, 0.6931472
    %v69 = vlog2.pop %v64
    %v70 = vmul.f32 %v69, 0.6931472
    %v71 = vmax.f32 %v68, -100.0
    %v72 = vmax.f32 %v70, -100.0
    %v73 = vsub.f32 1.0, %v63
    %v74 = vsub.f32 1.0, %v64
    %v75 = vlog2.pop %v73
    %v76 = vmul.f32 %v75, 0.6931472
    %v77 = vlog2.pop %v74
    %v78 = vmul.f32 %v77, 0.6931472
    %v79 = vmax.f32 %v76, -100.0
    %v80 = vmax.f32 %v78, -100.0
    %v81 = vsub.f32 %v71, %v79
    %v82 = vsub.f32 %v72, %v80
    %v83 = vmul.f32 %v65, %v81
    %v84 = vmul.f32 %v66, %v82
    %v85 = vadd.f32 %v79, %v83
    %v86 = vadd.f32 %v80, %v84
    %v87 = vmul.f32 %v63, %v65
    %v88 = vmul.f32 %v64, %v66
    %v89 = vadd.f32 %v87, %v88
    %v90 = vadd.f32 %v63, %v65
    %v91 = vadd.f32 %v64, %v66
    %v92 = vadd.f32 %v90, %v91
    %v93 = vadd.f32 %v85, %v86
    %v94 = vld [vmem:[#allocation7] sm:$0xff]
    %v95 = vadd.f32 %v94, %v89
    %96 = vst [vmem:[#allocation7] sm:$0xff] %v95
    %v97 = vld [vmem:[#allocation8] sm:$0xff]
    %v98 = vadd.f32 %v97, %v92
    %99 = vst [vmem:[#allocation8] sm:$0xff] %v98
    %v100 = vld [vmem:[#allocation10] sm:$0xff]
    %v101 = vadd.f32 %v100, %v93
    %102 = vst [vmem:[#allocation10] sm:$0xff] %v101
    // Predicated region
    $region22: #{tpu_custom_call.1} parent=1 // pred_check
      _
    $region23: #{tpu_custom_call.1} parent=1 // pred_check_branch
      %104 = sbr.rel (0) target = $region25
    $region24: #{tpu_custom_call.1} parent=1 // pred_region
      %s106 = ssub.s32 128, 128
      %107 = vsyncadd [#allocation4], %s106
      %s109 = sshll.u32 [#allocation7], 4
      %s110 = int_to_ptr.vmem [resolvable:$true] %s109
      %112 = dma.vmem_to_hbm [thread:$0]  %s110, 128, %s2, [#allocation4]
    $region25: #{tpu_custom_call.1} parent=1 // pred_fallthru
      _
    // Predicated region
    $region26: #{tpu_custom_call.1} parent=1 // pred_check
      _
    $region27: #{tpu_custom_call.1} parent=1 // pred_check_branch
      %114 = sbr.rel (0) target = $region29
    $region28: #{tpu_custom_call.1} parent=1 // pred_region
      %s116 = ssub.s32 128, 128
      %117 = vsyncadd [#allocation9], %s116
      %s119 = sshll.u32 [#allocation8], 4
      %s120 = int_to_ptr.vmem [resolvable:$true] %s119
      %122 = dma.vmem_to_hbm [thread:$0]  %s120, 128, %s3, [#allocation9]
    $region29: #{tpu_custom_call.1} parent=1 // pred_fallthru
      _
    // Predicated region
    $region30: #{tpu_custom_call.1} parent=1 // pred_check
      _
    $region31: #{tpu_custom_call.1} parent=1 // pred_check_branch
      %124 = sbr.rel (0) target = $region33
    $region32: #{tpu_custom_call.1} parent=1 // pred_region
      %s126 = ssub.s32 128, 128
      %127 = vsyncadd [#allocation9], %s126
      %s129 = sshll.u32 [#allocation10], 4
      %s130 = int_to_ptr.vmem [resolvable:$true] %s129
      %132 = dma.vmem_to_hbm [thread:$0]  %s130, 128, %s4, [#allocation9]
    $region33: #{tpu_custom_call.1} parent=1 // pred_fallthru
      _
    // Predicated region
    $region34: #{tpu_custom_call.1} parent=1 // pred_check
      _
    $region35: #{tpu_custom_call.1} parent=1 // pred_check_branch
      %134 = sbr.rel (0) target = $region37
    $region36: #{tpu_custom_call.1} parent=1 // pred_region
      %135 = dma.done [#allocation4], 128
    $region37: #{tpu_custom_call.1} parent=1 // pred_fallthru
      _
    // Predicated region
    $region38: #{tpu_custom_call.1} parent=1 // pred_check
      _
    $region39: #{tpu_custom_call.1} parent=1 // pred_check_branch
      %137 = sbr.rel (0) target = $region41
    $region40: #{tpu_custom_call.1} parent=1 // pred_region
      %138 = dma.done [#allocation9], 128
    $region41: #{tpu_custom_call.1} parent=1 // pred_fallthru
      _
    // Predicated region
    $region42: #{tpu_custom_call.1} parent=1 // pred_check
      _
    $region43: #{tpu_custom_call.1} parent=1 // pred_check_branch
      %140 = sbr.rel (0) target = $region45
    $region44: #{tpu_custom_call.1} parent=1 // pred_region
      %141 = dma.done [#allocation9], 128
    $region45: #{tpu_custom_call.1} parent=1 // pred_fallthru
      _
    %142 = vsyncpa [#allocation3], 1
    %143 = vsyncpa [#allocation6], 1
    %144 = vsyncpa [#allocation4], 1
    %145 = vsyncpa [#allocation9], 1

</llo_original>
